<compile_context>
chip_gen: v5e
topology: v5e:2x2
jax: 0.10.0
libtpu: 0.0.40
codegen_flags: <defaults>
</compile_context>

<pallas_src>
import math
import functools

import jax
import jax.numpy as jnp
from jax.experimental import pallas as pl
from jax.experimental.pallas import tpu as pltpu


_LN_EPS = 1e-6          # reference transformer uses eps=1e-6 (not the torch default 1e-5)
_NEG_INF = -1e9
_FFN_CHUNK = 512        # K-tile of the FFN inner dim kept live inside the fused kernel


def _vmem_limit_bytes():
    """Generation-aware scoped-VMEM request: ~75% of physical, capped at 100 MiB.
       v7x (64 MiB physical) -> 48 MiB; v5e/v6e (128 MiB) -> 96 MiB."""
    cap = 128 * 1024 * 1024
    try:
        info = pltpu.get_tpu_info()
        cap = int(getattr(info, "vmem_capacity_bytes", cap) or cap)
    except Exception:
        pass
    return min(cap * 3 // 4, 100 * 1024 * 1024)


_VMEM_LIMIT = _vmem_limit_bytes()


# ---------------------------------------------------------------------------
# Helpers
# ---------------------------------------------------------------------------

_ROW_MENU = (512, 256, 128, 64, 32, 16, 8)
_ROW_MENU_ELEMWISE = (1024,) + _ROW_MENU   # larger tiles allowed for pure element-wise kernels


def _row_block(m, menu=_ROW_MENU):
    """Largest row tile from the menu that divides m AND leaves >=2 grid steps
       (v7x has 2 TensorCores); fall back to the largest divisor, else full extent."""
    for t in menu:
        if m % t == 0 and m // t >= 2:
            return t
    for t in menu:
        if m % t == 0:
            return t
    return m


def _cp(n_parallel=1):
    return pltpu.CompilerParams(
        dimension_semantics=("parallel",) * n_parallel,
        vmem_limit_bytes=_VMEM_LIMIT)


def _ln(x, g, b):
    mu = jnp.mean(x, axis=-1, keepdims=True)
    var = jnp.mean(jnp.square(x - mu), axis=-1, keepdims=True)
    return (x - mu) * jax.lax.rsqrt(var + _LN_EPS) * g + b


# ---------------------------------------------------------------------------
# Pallas kernels
# ---------------------------------------------------------------------------

def _layernorm_kernel(x_ref, g_ref, b_ref, o_ref):
    o_ref[...] = _ln(x_ref[...].astype(jnp.float32),
                     g_ref[...], b_ref[...]).astype(o_ref.dtype)


def _ln_qkv_kernel(x_ref, g_ref, b_ref, w_ref, q_ref, kv_ref, *, hidden):
    """q = LN(x) @ Wq ; kv = LN(x) @ Wkv  (fused (H,3H) weight, q-scale folded into Wq)."""
    y = _ln(x_ref[...].astype(jnp.float32), g_ref[...], b_ref[...]).astype(jnp.bfloat16)
    q_ref[...] = jnp.dot(y, w_ref[:, :hidden],
                         preferred_element_type=jnp.float32).astype(q_ref.dtype)
    kv_ref[...] = jnp.dot(y, w_ref[:, hidden:],
                          preferred_element_type=jnp.float32).astype(kv_ref.dtype)


def _matmul_kernel(x_ref, w_ref, o_ref):
    o_ref[...] = jnp.dot(x_ref[...].astype(jnp.bfloat16), w_ref[...],
                         preferred_element_type=jnp.float32).astype(o_ref.dtype)


def _matmul_bias_kernel(x_ref, w_ref, b_ref, o_ref):
    o_ref[...] = (jnp.dot(x_ref[...].astype(jnp.bfloat16), w_ref[...],
                          preferred_element_type=jnp.float32)
                  + b_ref[...]).astype(o_ref.dtype)


def _attn_kernel(q_ref, kv_ref, m_ref, o_ref, *, heads, hidden):
    """Multi-head attention on one (batch, q-tile) block.

    q_ref  (1, tq, H)   bf16 (pre-scaled via the projection weights)
    kv_ref (1, Lk, 2H)  bf16 (K then V)
    m_ref  (1, tq, Lk)  int8 (1 == masked)
    o_ref  (1, tq, H)   bf16
    Heads are a static unrolled loop with per-head ref loads and direct per-head
    output stores (no concatenate, no long-lived fp32 head outputs)."""
    dk = hidden // heads
    bias = m_ref[0].astype(jnp.float32) * jnp.float32(_NEG_INF)   # (tq, Lk), shared by heads
    for h in range(heads):
        lo, hi = h * dk, (h + 1) * dk
        qh = q_ref[0, :, lo:hi]                                   # (tq, dk) bf16
        kh = kv_ref[0, :, lo:hi]                                  # (Lk, dk) bf16
        vh = kv_ref[0, :, hidden + lo:hidden + hi]                # (Lk, dk) bf16
        s = jax.lax.dot_general(qh, kh, (((1,), (1,)), ((), ())),
                                preferred_element_type=jnp.float32)  # (tq, Lk)
        s = s + bias
        s = s - jnp.max(s, axis=-1, keepdims=True)
        e = jnp.exp(s)
        p = e * pl.reciprocal(jnp.sum(e, axis=-1, keepdims=True), approx=True)
        o_ref[0, :, lo:hi] = jnp.dot(p.astype(jnp.bfloat16), vh,
                                     preferred_element_type=jnp.float32).astype(o_ref.dtype)


def _attn_out_ffn_kernel(a_ref, wo_ref, r_ref, g_ref, b_ref,
                         w1_ref, b1_ref, w2_ref, b2_ref, o_ref, *, ffn_chunk):
    """x1 = r + a @ wo ;  o = x1 + FFN(LN(x1)) with the FFN inner dim K-tiled."""
    x1 = r_ref[...].astype(jnp.float32) + jnp.dot(
        a_ref[...].astype(jnp.bfloat16), wo_ref[...], preferred_element_type=jnp.float32)
    y = _ln(x1, g_ref[...], b_ref[...]).astype(jnp.bfloat16)
    acc = x1 + b2_ref[...]
    inner = w1_ref.shape[1]
    for c0 in range(0, inner, ffn_chunk):
        c1 = min(c0 + ffn_chunk, inner)
        h = jnp.dot(y, w1_ref[:, c0:c1],
                    preferred_element_type=jnp.float32) + b1_ref[:, c0:c1]
        h = jnp.maximum(h, 0.0).astype(jnp.bfloat16)
        acc = acc + jnp.dot(h, w2_ref[c0:c1, :], preferred_element_type=jnp.float32)
    o_ref[...] = acc.astype(o_ref.dtype)


def _attn_out_lnq_kernel(a_ref, wo_ref, r_ref, g_ref, b_ref, wq_ref, x_ref, q_ref):
    """x1 = r + a @ wo ;  q = LN(x1) @ wq   (decoder self-attn -> cross-attn boundary)."""
    x1 = r_ref[...].astype(jnp.float32) + jnp.dot(
        a_ref[...].astype(jnp.bfloat16), wo_ref[...], preferred_element_type=jnp.float32)
    x_ref[...] = x1.astype(x_ref.dtype)
    y = _ln(x1, g_ref[...], b_ref[...]).astype(jnp.bfloat16)
    q_ref[...] = jnp.dot(y, wq_ref[...],
                         preferred_element_type=jnp.float32).astype(q_ref.dtype)


# ---------------------------------------------------------------------------
# Kernel wrappers (row-tiled grids, weights VMEM-resident, bf16 activation handoff)
# ---------------------------------------------------------------------------

def layernorm(x, g, b):
    shp = x.shape
    K = shp[-1]
    x2 = x.reshape(-1, K)
    M = x2.shape[0]
    bm = _row_block(M, _ROW_MENU_ELEMWISE)
    out = pl.pallas_call(
        _layernorm_kernel,
        grid=(M // bm,),
        in_specs=[pl.BlockSpec((bm, K), lambda i: (i, 0)),
                  pl.BlockSpec((1, K), lambda i: (0, 0)),
                  pl.BlockSpec((1, K), lambda i: (0, 0))],
        out_specs=pl.BlockSpec((bm, K), lambda i: (i, 0)),
        out_shape=jax.ShapeDtypeStruct((M, K), jnp.bfloat16),
        compiler_params=_cp(),
    )(x2, g, b)
    return out.reshape(shp)


def ln_qkv(x, g, b, w, hidden):
    """LN + fused QKV projection, split into q (B,L,H) and kv (B,L,2H) bf16 outputs."""
    B, L, K = x.shape
    x2 = x.reshape(-1, K)
    M = x2.shape[0]
    bm = _row_block(M)
    q, kv = pl.pallas_call(
        functools.partial(_ln_qkv_kernel, hidden=hidden),
        grid=(M // bm,),
        in_specs=[pl.BlockSpec((bm, K), lambda i: (i, 0)),
                  pl.BlockSpec((1, K), lambda i: (0, 0)),
                  pl.BlockSpec((1, K), lambda i: (0, 0)),
                  pl.BlockSpec((K, 3 * hidden), lambda i: (0, 0))],
        out_specs=(pl.BlockSpec((bm, hidden), lambda i: (i, 0)),
                   pl.BlockSpec((bm, 2 * hidden), lambda i: (i, 0))),
        out_shape=(jax.ShapeDtypeStruct((M, hidden), jnp.bfloat16),
                   jax.ShapeDtypeStruct((M, 2 * hidden), jnp.bfloat16)),
        compiler_params=_cp(),
    )(x2, g, b, w)
    return q.reshape(B, L, hidden), kv.reshape(B, L, 2 * hidden)


def matmul(x, w):
    """x @ w (bias-free), bf16 output."""
    shp = x.shape
    K = shp[-1]
    N = w.shape[1]
    x2 = x.reshape(-1, K)
    M = x2.shape[0]
    bm = _row_block(M)
    out = pl.pallas_call(
        _matmul_kernel,
        grid=(M // bm,),
        in_specs=[pl.BlockSpec((bm, K), lambda i: (i, 0)),
                  pl.BlockSpec((K, N), lambda i: (0, 0))],
        out_specs=pl.BlockSpec((bm, N), lambda i: (i, 0)),
        out_shape=jax.ShapeDtypeStruct((M, N), jnp.bfloat16),
        compiler_params=_cp(),
    )(x2, w)
    return out.reshape(shp[:-1] + (N,))


def linear_head(x, p):
    """Classification head: x @ w + b with lane-padded N (fp32), sliced back to true width."""
    shp = x.shape
    K = shp[-1]
    Np = p['w'].shape[1]
    x2 = x.reshape(-1, K)
    M = x2.shape[0]
    bm = _row_block(M)
    out = pl.pallas_call(
        _matmul_bias_kernel,
        grid=(M // bm,),
        in_specs=[pl.BlockSpec((bm, K), lambda i: (i, 0)),
                  pl.BlockSpec((K, Np), lambda i: (0, 0)),
                  pl.BlockSpec((1, Np), lambda i: (0, 0))],
        out_specs=pl.BlockSpec((bm, Np), lambda i: (i, 0)),
        out_shape=jax.ShapeDtypeStruct((M, Np), jnp.float32),
        compiler_params=_cp(),
    )(x2, p['w'], p['b'])
    return out[:, :p['n']].reshape(shp[:-1] + (p['n'],))


def attention(q, kv, mask_i8, heads, hidden):
    """q: (B,Lq,H) bf16, kv: (B,Lk,2H) bf16, mask: (B,Lq,Lk) int8 (1 == masked)."""
    B, Lq, H = q.shape
    Lk = kv.shape[1]
    H2 = kv.shape[2]
    tq = _row_block(Lq)                       # flash-style query blocking
    kern = functools.partial(_attn_kernel, heads=heads, hidden=hidden)
    return pl.pallas_call(
        kern,
        grid=(B, Lq // tq),
        in_specs=[pl.BlockSpec((1, tq, H), lambda b, i: (b, i, 0)),
                  pl.BlockSpec((1, Lk, H2), lambda b, i: (b, 0, 0)),
                  pl.BlockSpec((1, tq, Lk), lambda b, i: (b, i, 0))],
        out_specs=pl.BlockSpec((1, tq, hidden), lambda b, i: (b, i, 0)),
        out_shape=jax.ShapeDtypeStruct((B, Lq, hidden), jnp.bfloat16),
        compiler_params=_cp(2),
    )(q, kv, mask_i8)


def attn_out_ffn(attn, wo, residual, g, b, w1, b1, w2, b2):
    """Fused: x1 = residual + attn @ wo ; out = x1 + FFN(LN(x1))."""
    B, L, H = attn.shape
    inner = w1.shape[1]
    a2 = attn.reshape(-1, H)
    r2 = residual.reshape(-1, H)
    M = a2.shape[0]
    bm = _row_block(M)
    chunk = inner if inner <= _FFN_CHUNK else _FFN_CHUNK
    out = pl.pallas_call(
        functools.partial(_attn_out_ffn_kernel, ffn_chunk=chunk),
        grid=(M // bm,),
        in_specs=[pl.BlockSpec((bm, H), lambda i: (i, 0)),
                  pl.BlockSpec((H, H), lambda i: (0, 0)),
                  pl.BlockSpec((bm, H), lambda i: (i, 0)),
                  pl.BlockSpec((1, H), lambda i: (0, 0)),
                  pl.BlockSpec((1, H), lambda i: (0, 0)),
                  pl.BlockSpec((H, inner), lambda i: (0, 0)),
                  pl.BlockSpec((1, inner), lambda i: (0, 0)),
                  pl.BlockSpec((inner, H), lambda i: (0, 0)),
                  pl.BlockSpec((1, H), lambda i: (0, 0))],
        out_specs=pl.BlockSpec((bm, H), lambda i: (i, 0)),
        out_shape=jax.ShapeDtypeStruct((M, H), jnp.bfloat16),
        compiler_params=_cp(),
    )(a2, wo, r2, g, b, w1, b1, w2, b2)
    return out.reshape(B, L, H)


def attn_out_ln_q(attn, wo, residual, g, b, wq):
    """Fused: x1 = residual + attn @ wo ; q = LN(x1) @ wq.  Returns (x1, q) both bf16."""
    B, L, H = attn.shape
    N = wq.shape[1]
    a2 = attn.reshape(-1, H)
    r2 = residual.reshape(-1, H)
    M = a2.shape[0]
    bm = _row_block(M)
    x1, q = pl.pallas_call(
        _attn_out_lnq_kernel,
        grid=(M // bm,),
        in_specs=[pl.BlockSpec((bm, H), lambda i: (i, 0)),
                  pl.BlockSpec((H, H), lambda i: (0, 0)),
                  pl.BlockSpec((bm, H), lambda i: (i, 0)),
                  pl.BlockSpec((1, H), lambda i: (0, 0)),
                  pl.BlockSpec((1, H), lambda i: (0, 0)),
                  pl.BlockSpec((H, N), lambda i: (0, 0))],
        out_specs=(pl.BlockSpec((bm, H), lambda i: (i, 0)),
                   pl.BlockSpec((bm, N), lambda i: (i, 0))),
        out_shape=(jax.ShapeDtypeStruct((M, H), jnp.bfloat16),
                   jax.ShapeDtypeStruct((M, N), jnp.bfloat16)),
        compiler_params=_cp(),
    )(a2, wo, r2, g, b, wq)
    return x1.reshape(B, L, H), q.reshape(B, L, N)


# ---------------------------------------------------------------------------
# Transformer building blocks
# ---------------------------------------------------------------------------

def encoder_forward(x, self_mask_i8, p, heads, hidden):
    for lp in p['layers']:
        q, kv = ln_qkv(x, lp['ln1_g'], lp['ln1_b'], lp['wqkv'], hidden)
        attn = attention(q, kv, self_mask_i8, heads, hidden)
        x = attn_out_ffn(attn, lp['wo'], x, lp['ln2_g'], lp['ln2_b'],
                         lp['w1'], lp['b1'], lp['w2'], lp['b2'])
    return layernorm(x, p['ln_g'], p['ln_b'])


def decoder_forward(x, enc_out, self_mask_i8, cross_mask_i8, p, heads, hidden):
    for lp in p['layers']:
        # masked self-attention (causal mask only, as in the PyTorch reference's decode())
        q, kv = ln_qkv(x, lp['ln1_g'], lp['ln1_b'], lp['wqkv'], hidden)
        attn = attention(q, kv, self_mask_i8, heads, hidden)
        # out-proj + residual fused with the cross-attention pre-LN / Q projection
        x, qc = attn_out_ln_q(attn, lp['wo'], x, lp['lnc_g'], lp['lnc_b'], lp['wq_c'])
        kvc = matmul(enc_out, lp['wkv_c'])
        attn2 = attention(qc, kvc, cross_mask_i8, heads, hidden)
        # cross out-proj + residual fused with the FFN sub-layer
        x = attn_out_ffn(attn2, lp['wo_c'], x, lp['ln2_g'], lp['ln2_b'],
                         lp['w1'], lp['b1'], lp['w2'], lp['b2'])
    return layernorm(x, p['ln_g'], p['ln_b'])


# ---------------------------------------------------------------------------
# Glossification forward (JAX glue: embeddings, masks, position encoding)
# ---------------------------------------------------------------------------

def get_position_encoding(length, hidden):
    num_ts = hidden // 2
    log_inc = math.log(10000.0 / 1.0) / max(num_ts - 1, 1)
    inv = jnp.exp(jnp.arange(num_ts, dtype=jnp.float32) * -log_inc)
    pos = jnp.arange(length, dtype=jnp.float32)
    st = pos[:, None] * inv[None, :]
    sig = jnp.concatenate([jnp.sin(st), jnp.cos(st)], axis=1)
    if hidden % 2:
        sig = jnp.pad(sig, ((0, 0), (0, 1)))
    return sig[None]  # (1, L, H)


def _pad_attn_mask(tokens, pad_idx, q_len):
    """(B, q_len, Lk) int8, 1 == masked key position."""
    pad = (tokens == pad_idx)
    B, Lk = tokens.shape
    return jnp.broadcast_to(pad[:, None, :], (B, q_len, Lk)).astype(jnp.int8)


def _causal_mask(batch, length):
    tri = jnp.triu(jnp.ones((length, length), jnp.int8), k=1)
    return jnp.broadcast_to(tri[None], (batch, length, length))


def _embed(tokens, emb, pad_idx, hidden):
    pad = (tokens == pad_idx)
    x = jnp.take(emb, tokens, axis=0)                 # embedding gather (XLA glue)
    x = jnp.where(pad[:, :, None], 0.0, x)            # masked_fill_(pad, 0)
    x = x * (hidden ** 0.5) + get_position_encoding(tokens.shape[1], hidden)
    return x.astype(jnp.bfloat16)                      # dropout -> identity (inference)


def generator_forward(params, inputs, programs, pad_src, pad_pro, hidden, heads):
    B, Li = inputs.shape
    Lp = programs.shape[1]

    # encode
    x = _embed(inputs, params['gen_embedding'], pad_src, hidden)
    enc_mask = _pad_attn_mask(inputs, pad_src, Li)
    enc_out = encoder_forward(x, enc_mask, params['gen_encoder'], heads, hidden)

    # decode (shared i/p embedding, shift-right programs)
    p_pad = (programs == pad_pro)
    pe = jnp.take(params['gen_embedding'], programs, axis=0)
    pe = jnp.where(p_pad[:, :, None], 0.0, pe)
    pe = jnp.pad(pe[:, :-1], ((0, 0), (1, 0), (0, 0)))          # shift right, prepend zeros
    pe = (pe * (hidden ** 0.5) + get_position_encoding(Lp, hidden)).astype(jnp.bfloat16)

    self_mask = _causal_mask(B, Lp)
    cross_mask = _pad_attn_mask(inputs, pad_src, Lp)
    return decoder_forward(pe, enc_out, self_mask, cross_mask,
                           params['gen_decoder'], heads, hidden)


def executor_forward(params, targets, pad_trg, hidden, heads):
    B, Lt = targets.shape
    x = _embed(targets, params['exe_embedding'], pad_trg, hidden)
    enc_mask = _pad_attn_mask(targets, pad_trg, Lt)
    return encoder_forward(x, enc_mask, params['exe_encoder'], heads, hidden)


def glossification_forward(params, inputs, programs, targets, editing_casual_mask,
                           pad_src, pad_pro, pad_trg, hidden, heads):
    gen_out = generator_forward(params, inputs, programs, pad_src, pad_pro, hidden, heads)
    exc_out = executor_forward(params, targets, pad_trg, hidden, heads)

    # editing causal attention (no pre-LN, no residual, bias-free projections)
    ep = params['edit_attn']
    q = matmul(gen_out, ep['wq'])
    kv = matmul(exc_out, ep['wkv'])
    attn = attention(q, kv, editing_casual_mask.astype(jnp.int8), heads, hidden)
    edit_out = matmul(attn, ep['wo'])

    edit_op = linear_head(edit_out[:, 1::2, :], params['linear_edit_op'])
    edit_num = linear_head(edit_out[:, ::2, :], params['linear_edit_num'])
    return edit_op, edit_num


# ---------------------------------------------------------------------------
# Deterministic parameter initialization (synthetic weights, compute layout:
# fused QKV / KV projections, bf16 matmul weights, fp32 LN params & biases,
# 1/sqrt(dk) query scale folded into the Q projection columns)
# ---------------------------------------------------------------------------

def _w(key, fan_in, fan_out, q_scale_cols=0, q_scale=1.0):
    w = jax.random.normal(key, (fan_in, fan_out), jnp.float32) * fan_in ** -0.5
    if q_scale_cols:
        w = w.at[:, :q_scale_cols].multiply(q_scale)
    return w.astype(jnp.bfloat16)


def _ln_params(H):
    return jnp.ones((1, H), jnp.float32), jnp.zeros((1, H), jnp.float32)


def init_enc_layer(key, H, I, heads):
    ks = jax.random.split(key, 4)
    scale = (H // heads) ** -0.5
    g1, b1 = _ln_params(H)
    g2, b2 = _ln_params(H)
    return {'ln1_g': g1, 'ln1_b': b1,
            'wqkv': _w(ks[0], H, 3 * H, q_scale_cols=H, q_scale=scale),
            'wo': _w(ks[1], H, H),
            'ln2_g': g2, 'ln2_b': b2,
            'w1': _w(ks[2], H, I), 'b1': jnp.zeros((1, I), jnp.float32),
            'w2': _w(ks[3], I, H), 'b2': jnp.zeros((1, H), jnp.float32)}


def init_dec_layer(key, H, I, heads):
    ks = jax.random.split(key, 7)
    scale = (H // heads) ** -0.5
    g1, b1 = _ln_params(H)
    gc, bc = _ln_params(H)
    g2, b2 = _ln_params(H)
    return {'ln1_g': g1, 'ln1_b': b1,
            'wqkv': _w(ks[0], H, 3 * H, q_scale_cols=H, q_scale=scale),
            'wo': _w(ks[1], H, H),
            'lnc_g': gc, 'lnc_b': bc,
            'wq_c': _w(ks[2], H, H, q_scale_cols=H, q_scale=scale),
            'wkv_c': _w(ks[3], H, 2 * H), 'wo_c': _w(ks[4], H, H),
            'ln2_g': g2, 'ln2_b': b2,
            'w1': _w(ks[5], H, I), 'b1': jnp.zeros((1, I), jnp.float32),
            'w2': _w(ks[6], I, H), 'b2': jnp.zeros((1, H), jnp.float32)}


def init_encoder(key, H, I, n, heads):
    ks = jax.random.split(key, n)
    g, b = _ln_params(H)
    return {'layers': [init_enc_layer(k, H, I, heads) for k in ks], 'ln_g': g, 'ln_b': b}


def init_decoder(key, H, I, n, heads):
    ks = jax.random.split(key, n)
    g, b = _ln_params(H)
    return {'layers': [init_dec_layer(k, H, I, heads) for k in ks], 'ln_g': g, 'ln_b': b}


def init_head(key, H, N):
    npad = max(128, ((N + 127) // 128) * 128)      # lane-dense output, sliced in wrapper
    w = jnp.zeros((H, npad), jnp.float32)
    w = w.at[:, :N].set(jax.random.normal(key, (H, N), jnp.float32) * H ** -0.5)
    return {'w': w.astype(jnp.bfloat16), 'b': jnp.zeros((1, npad), jnp.float32), 'n': N}


def init_glossification(key, i_vocab, p_vocab, t_vocab, H, I, heads,
                        gen_enc_n, gen_dec_n, exe_enc_n, edit_op_num):
    ks = jax.random.split(key, 9)
    scale = (H // heads) ** -0.5
    return {
        # share_target_embeddings=True -> i/p embeddings shared, init std = H^-0.5
        'gen_embedding': jax.random.normal(ks[0], (i_vocab, H), jnp.float32) * H ** -0.5,
        'gen_encoder': init_encoder(ks[1], H, I, gen_enc_n, heads),
        'gen_decoder': init_decoder(ks[2], H, I, gen_dec_n, heads),
        # Executor embedding uses default nn.Embedding init N(0, 1)
        'exe_embedding': jax.random.normal(ks[3], (t_vocab, H), jnp.float32),
        'exe_encoder': init_encoder(ks[4], H, I, exe_enc_n, heads),
        'edit_attn': {'wq': _w(ks[5], H, H, q_scale_cols=H, q_scale=scale),
                      'wkv': _w(ks[6], H, 2 * H),
                      'wo': _w(jax.random.fold_in(ks[6], 1), H, H)},
        'linear_edit_op': init_head(ks[7], H, edit_op_num),
        'linear_edit_num': init_head(ks[8], H, p_vocab),
    }


# ---------------------------------------------------------------------------
# Example run
# ---------------------------------------------------------------------------

if __name__ == "__main__":
    B, Li, Lp, Lt = 2, 8, 8, 8
    H, INNER, HEADS = 32, 64, 4
    VOCAB = 50
    EDIT_OP_NUM = 4
    PAD = 0

    key = jax.random.PRNGKey(0)
    kparam, kin, kpro, ktgt = jax.random.split(key, 4)

    params = init_glossification(kparam, VOCAB, VOCAB, VOCAB, H, INNER, HEADS,
                                 gen_enc_n=2, gen_dec_n=1, exe_enc_n=1,
                                 edit_op_num=EDIT_OP_NUM)

    inputs = jax.random.randint(kin, (B, Li), 1, VOCAB)
    programs = jax.random.randint(kpro, (B, Lp), 1, VOCAB)
    targets = jax.random.randint(ktgt, (B, Lt), 1, VOCAB)
    # sprinkle some pad tokens to exercise the pad masks
    inputs = inputs.at[:, -1].set(PAD)
    targets = targets.at[0, -1].set(PAD)

    # editing causal mask: True = masked, shape (B, Lp, Lt)
    editing_casual_mask = jnp.broadcast_to(
        jnp.triu(jnp.ones((Lp, Lt), dtype=bool), k=1)[None], (B, Lp, Lt))

    edit_op, edit_num = glossification_forward(
        params, inputs, programs, targets, editing_casual_mask,
        pad_src=PAD, pad_pro=PAD, pad_trg=PAD, hidden=H, heads=HEADS)

    jax.block_until_ready((edit_op, edit_num))
    assert edit_op.shape == (B, Lp // 2, EDIT_OP_NUM), edit_op.shape
    assert edit_num.shape == (B, (Lp + 1) // 2, VOCAB), edit_num.shape
    assert bool(jnp.isfinite(edit_op).all()) and bool(jnp.isfinite(edit_num).all())
    print("KERNEL_OK")
</pallas_src>

<mosaic_0001>
module attributes {stable_mosaic.version = 11 : i64} {
  func.func @_ln_qkv_kernel(%arg0: i32, %arg1: memref<8x32xbf16, #tpu.memory_space<vmem>>, %arg2: memref<1x32xf32, #tpu.memory_space<vmem>>, %arg3: memref<1x32xf32, #tpu.memory_space<vmem>>, %arg4: memref<32x96xbf16, #tpu.memory_space<vmem>>, %arg5: memref<8x32xbf16, #tpu.memory_space<vmem>>, %arg6: memref<8x64xbf16, #tpu.memory_space<vmem>>) attributes {dimension_semantics = [#tpu.dimension_semantics<parallel>], iteration_bounds = array<i64: 2>, scalar_prefetch = 0 : i64, scratch_operands = 0 : i64, tpu.core_type = #tpu.core_type<tc>, window_params = [{transform_indices = @transform_0, window_bounds = array<i64: 8, 32>}, {pipeline_mode = #tpu.pipeline_mode<synchronous>, transform_indices = @transform_1, window_bounds = array<i64: 1, 32>}, {pipeline_mode = #tpu.pipeline_mode<synchronous>, transform_indices = @transform_2, window_bounds = array<i64: 1, 32>}, {pipeline_mode = #tpu.pipeline_mode<synchronous>, transform_indices = @transform_3, window_bounds = array<i64: 32, 96>}, {transform_indices = @transform_4, window_bounds = array<i64: 8, 32>}, {transform_indices = @transform_5, window_bounds = array<i64: 8, 64>}]} {
    %c0 = arith.constant 0 : index
    %c0_0 = arith.constant 0 : index
    %0 = vector.load %arg1[%c0, %c0_0] : memref<8x32xbf16, #tpu.memory_space<vmem>>, vector<8x32xbf16>
    %1 = arith.extf %0 : vector<8x32xbf16> to vector<8x32xf32>
    %c0_1 = arith.constant 0 : index
    %c0_2 = arith.constant 0 : index
    %2 = vector.load %arg2[%c0_1, %c0_2] : memref<1x32xf32, #tpu.memory_space<vmem>>, vector<1x32xf32>
    %c0_3 = arith.constant 0 : index
    %c0_4 = arith.constant 0 : index
    %3 = vector.load %arg3[%c0_3, %c0_4] : memref<1x32xf32, #tpu.memory_space<vmem>>, vector<1x32xf32>
    %cst = arith.constant dense<0.000000e+00> : vector<8xf32>
    %4 = vector.multi_reduction <add>, %1, %cst [1] : vector<8x32xf32> to vector<8xf32>
    %5 = vector.shape_cast %4 : vector<8xf32> to vector<8x1xf32>
    %cst_5 = arith.constant 3.200000e+01 : f32
    %6 = vector.broadcast %cst_5 : f32 to vector<8x1xf32>
    %7 = arith.divf %5, %6 : vector<8x1xf32>
    %8 = vector.broadcast %7 : vector<8x1xf32> to vector<8x32xf32>
    %9 = arith.subf %1, %8 : vector<8x32xf32>
    %10 = arith.mulf %9, %9 : vector<8x32xf32>
    %cst_6 = arith.constant dense<0.000000e+00> : vector<8xf32>
    %11 = vector.multi_reduction <add>, %10, %cst_6 [1] : vector<8x32xf32> to vector<8xf32>
    %12 = vector.shape_cast %11 : vector<8xf32> to vector<8x1xf32>
    %cst_7 = arith.constant 3.200000e+01 : f32
    %13 = vector.broadcast %cst_7 : f32 to vector<8x1xf32>
    %14 = arith.divf %12, %13 : vector<8x1xf32>
    %15 = vector.broadcast %7 : vector<8x1xf32> to vector<8x32xf32>
    %16 = arith.subf %1, %15 : vector<8x32xf32>
    %cst_8 = arith.constant 9.99999997E-7 : f32
    %17 = vector.broadcast %cst_8 : f32 to vector<8x1xf32>
    %18 = arith.addf %14, %17 : vector<8x1xf32>
    %19 = math.rsqrt %18 : vector<8x1xf32>
    %20 = vector.broadcast %19 : vector<8x1xf32> to vector<8x32xf32>
    %21 = arith.mulf %16, %20 : vector<8x32xf32>
    %22 = vector.broadcast %2 : vector<1x32xf32> to vector<8x32xf32>
    %23 = arith.mulf %21, %22 : vector<8x32xf32>
    %24 = vector.broadcast %3 : vector<1x32xf32> to vector<8x32xf32>
    %25 = arith.addf %23, %24 : vector<8x32xf32>
    %26 = arith.truncf %25 : vector<8x32xf32> to vector<8x32xbf16>
    %c0_9 = arith.constant 0 : index
    %c0_10 = arith.constant 0 : index
    %27 = vector.load %arg4[%c0_9, %c0_10] : memref<32x96xbf16, #tpu.memory_space<vmem>>, vector<32x32xbf16>
    %cst_11 = arith.constant dense<0.000000e+00> : vector<8x32xf32>
    %28 = tpu.matmul %26, %27, %cst_11 {dimension_numbers = #tpu.dot_dimension_numbers<[1], [0], [0], [1], [0, 0, 1, 1], [], []>} : vector<8x32xbf16>, vector<32x32xbf16>, vector<8x32xf32> -> vector<8x32xf32>
    %29 = arith.truncf %28 : vector<8x32xf32> to vector<8x32xbf16>
    %c0_12 = arith.constant 0 : index
    %c0_13 = arith.constant 0 : index
    %30 = vector.load %arg5[%c0_12, %c0_13] : memref<8x32xbf16, #tpu.memory_space<vmem>>, vector<8x32xbf16>
    tpu.vector_store %arg5[%c0_12, %c0_13], %29 {strides = array<i32>} : memref<8x32xbf16, #tpu.memory_space<vmem>>, vector<8x32xbf16>,
    %c0_14 = arith.constant 0 : index
    %c32 = arith.constant 32 : index
    %31 = vector.load %arg4[%c0_14, %c32] : memref<32x96xbf16, #tpu.memory_space<vmem>>, vector<32x64xbf16>
    %cst_15 = arith.constant dense<0.000000e+00> : vector<8x64xf32>
    %32 = tpu.matmul %26, %31, %cst_15 {dimension_numbers = #tpu.dot_dimension_numbers<[1], [0], [0], [1], [0, 0, 1, 1], [], []>} : vector<8x32xbf16>, vector<32x64xbf16>, vector<8x64xf32> -> vector<8x64xf32>
    %33 = arith.truncf %32 : vector<8x64xf32> to vector<8x64xbf16>
    %c0_16 = arith.constant 0 : index
    %c0_17 = arith.constant 0 : index
    %34 = vector.load %arg6[%c0_16, %c0_17] : memref<8x64xbf16, #tpu.memory_space<vmem>>, vector<8x64xbf16>
    tpu.vector_store %arg6[%c0_16, %c0_17], %33 {strides = array<i32>} : memref<8x64xbf16, #tpu.memory_space<vmem>>, vector<8x64xbf16>,
    return
  }
  func.func @transform_0(%arg0: i32) -> (i32, i32) {
    %c0_i32 = arith.constant 0 : i32
    %c0_i32_0 = arith.constant 0 : i32
    return %arg0, %c0_i32 : i32, i32
  }
  func.func @transform_1(%arg0: i32) -> (i32, i32) {
    %c0_i32 = arith.constant 0 : i32
    %c0_i32_0 = arith.constant 0 : i32
    %c0_i32_1 = arith.constant 0 : i32
    return %c0_i32, %c0_i32_0 : i32, i32
  }
  func.func @transform_2(%arg0: i32) -> (i32, i32) {
    %c0_i32 = arith.constant 0 : i32
    %c0_i32_0 = arith.constant 0 : i32
    %c0_i32_1 = arith.constant 0 : i32
    return %c0_i32, %c0_i32_0 : i32, i32
  }
  func.func @transform_3(%arg0: i32) -> (i32, i32) {
    %c0_i32 = arith.constant 0 : i32
    %c0_i32_0 = arith.constant 0 : i32
    %c0_i32_1 = arith.constant 0 : i32
    return %c0_i32, %c0_i32_0 : i32, i32
  }
  func.func @transform_4(%arg0: i32) -> (i32, i32) {
    %c0_i32 = arith.constant 0 : i32
    %c0_i32_0 = arith.constant 0 : i32
    return %arg0, %c0_i32 : i32, i32
  }
  func.func @transform_5(%arg0: i32) -> (i32, i32) {
    %c0_i32 = arith.constant 0 : i32
    %c0_i32_0 = arith.constant 0 : i32
    return %arg0, %c0_i32 : i32, i32
  }
}

</mosaic_0001>

<llo_original>
// kernel: tpu_custom_call.1
$region0: #{tpu_custom_call.1}
  #allocation0 [shape = 'u32[]', space=smem, size = 0x4, offset = 0x4, fixed_abs, tag = 'smem constant byte address 0x4 - core index']
  #allocation1 [shape = 'u32[72,128]{1,0:T(1,128)}', space=vmem, size = 0x9000, scoped, tag = 'internal scratch']
  %s0 = inlined_call_operand.hbm [shape: bf16[16,32], index: 0, kind: input, shape index: {}]
  %s1 = inlined_call_operand.hbm [shape: f32[1,32], index: 1, kind: input, shape index: {}]
  %s2 = inlined_call_operand.vmem [shape: f32[1,32], index: 2, kind: input, shape index: {}]
  %s3 = inlined_call_operand.hbm [shape: bf16[32,96], index: 3, kind: input, shape index: {}]
  %s4 = inlined_call_operand.hbm [shape: bf16[16,32], index: 4, kind: output, shape index: {0}]
  %s5 = inlined_call_operand.hbm [shape: bf16[16,64], index: 5, kind: output, shape index: {1}]
  %6 = xla_tuple %s4, %s5
  %s7 = sld [smem:[#allocation0]]
  $region69: #{tpu_custom_call.1} parent=0
    _
  %s9 = ssub.s32 1, %s7
  %s10 = scalar_select 0, %s9, %s7
  $region1: #{tpu_custom_call.1} parent=0
    #allocation2 [shape = 'u8[4096]{0}', space=vmem, size = 0x1000, scoped, tag = 'input window, operand 0']
    #allocation3 [shape = 's32[2]{0}', space=sflag, size = 0x8, scoped, tag = 'scoped memory for tpu_custom_call.1']
    #allocation4 [shape = 's32[2]{0}', space=sflag, size = 0x8, scoped, tag = 'scoped memory for tpu_custom_call.1']
    #allocation5 [shape = 'u8[512]{0}', space=vmem, size = 0x400, scoped, tag = 'input window, operand 1, single buffered']
    #allocation6 [shape = 's32[1]{0}', space=sflag, size = 0x4, scoped, tag = 'scoped memory for tpu_custom_call.1']
    #allocation7 [shape = 'u8[8192]{0}', space=vmem, size = 0x2000, scoped, tag = 'input window, operand 3, single buffered']
    #allocation8 [shape = 'u8[4096]{0}', space=vmem, size = 0x1000, scoped, tag = 'output window, operand 0']
    #allocation9 [shape = 'u8[4096]{0}', space=vmem, size = 0x1000, scoped, tag = 'output window, operand 1']
    #allocation10 [shape = 's32[2]{0}', space=sflag, size = 0x8, scoped, tag = 'scoped memory for tpu_custom_call.1']
    %11 = vsyncpa [#allocation3], 0
    %s12 = scalar_lea.sflag [#allocation3], 1
    %13 = vsyncpa %s12, 0
    %14 = vsyncpa [#allocation6], 0
    %15 = vsyncpa [#allocation4], 0
    %s16 = scalar_lea.sflag [#allocation4], 1
    %17 = vsyncpa %s16, 0
    %18 = vsyncpa [#allocation10], 0
    %s19 = scalar_lea.sflag [#allocation10], 1
    %20 = vsyncpa %s19, 0
    loop: start=0, step=1, limit=4
    $region2: #{tpu_custom_call.1} parent=1 // loop_pre_header
      _
    $region3: #{tpu_custom_call.1} parent=1 // loop_header
      %s22 = sphi 0, %s26
      %p23 = scmp.ge.s32.totalorder %s22, 4
      %s32 = sphi 0, %s34
      %s35 = sphi 0, %s32
      %s36 = sphi 0, %s35
      %s52 = sphi 0, %s36
      %s56 = sphi 0, %s56
      %s58 = sphi 0, %s56
      %s59 = sphi 0, %s58
      %s73 = sphi 0, %s59
      %s77 = sphi 0, %s77
      %s79 = sphi 0, %s77
      %s80 = sphi 0, %s79
      %s94 = sphi 0, %s80
      %s98 = sphi 0, %s98
      %s100 = sphi 0, %s98
      %s101 = sphi 0, %s100
      %s115 = sphi 0, %s101
      %s121 = sphi 0, %s123
      %s124 = sphi 0, %s121
      %s125 = sphi 0, %s124
      %s141 = sphi 0, %s125
      %s147 = sphi 0, %s149
      %s150 = sphi 0, %s147
      %s151 = sphi 0, %s150
      %s167 = sphi 0, %s151
    $region4: #{tpu_custom_call.1} parent=1 // loop_header_branch
      %25 = sbr.rel (%p23) target = $region8
    $region5: #{tpu_custom_call.1} parent=1 // loop_body
      %s27 = ssub.s32 %s22, 1
      %s28 = ssub.s32 %s22, 2
      %s29 = sadd.s32 %s22, 1
      %s30 = ssub.s32 %s22, %s29
      %p31 = scmp.eq.s32.totalorder %s30, 0
      %s33 = sadd.s32 %s32, 1
      %s34 = scalar_select %p31, %s32, %s33
      %p37 = pneg %p31
      %p38 = scmp.eq.s32.totalorder %s22, 1
      %p39 = por %p37, %p38
      %p40 = scmp.ne.s32.totalorder %s32, %s35
      %p41 = scmp.eq.s32.totalorder %s22, 0
      %p42 = por %p40, %p41
      %p43 = scmp.ne.s32.totalorder %s32, %s35
      %p44 = scmp.eq.s32.totalorder %s27, 1
      %p45 = por %p43, %p44
      %p46 = scmp.ne.s32.totalorder %s35, %s36
      %p47 = scmp.eq.s32.totalorder %s27, 0
      %p48 = por %p46, %p47
      %p49 = scmp.ne.s32.totalorder %s35, %s36
      %p50 = scmp.eq.s32.totalorder %s28, 1
      %p51 = por %p49, %p50
      %p53 = scmp.ne.s32.totalorder %s36, %s52
      %p54 = scmp.eq.s32.totalorder %s28, 0
      %p55 = por %p53, %p54
      %s57 = sadd.s32 %s56, 1
      %p60 = scmp.eq.s32.totalorder %s22, 1
      %p61 = scmp.ne.s32.totalorder %s56, %s58
      %p62 = scmp.eq.s32.totalorder %s22, 0
      %p63 = por %p61, %p62
      %p64 = scmp.ne.s32.totalorder %s56, %s58
      %p65 = scmp.eq.s32.totalorder %s27, 1
      %p66 = por %p64, %p65
      %p67 = scmp.ne.s32.totalorder %s58, %s59
      %p68 = scmp.eq.s32.totalorder %s27, 0
      %p69 = por %p67, %p68
      %p70 = scmp.ne.s32.totalorder %s58, %s59
      %p71 = scmp.eq.s32.totalorder %s28, 1
      %p72 = por %p70, %p71
      %p74 = scmp.ne.s32.totalorder %s59, %s73
      %p75 = scmp.eq.s32.totalorder %s28, 0
      %p76 = por %p74, %p75
      %s78 = sadd.s32 %s77, 1
      %p81 = scmp.eq.s32.totalorder %s22, 1
      %p82 = scmp.ne.s32.totalorder %s77, %s79
      %p83 = scmp.eq.s32.totalorder %s22, 0
      %p84 = por %p82, %p83
      %p85 = scmp.ne.s32.totalorder %s77, %s79
      %p86 = scmp.eq.s32.totalorder %s27, 1
      %p87 = por %p85, %p86
      %p88 = scmp.ne.s32.totalorder %s79, %s80
      %p89 = scmp.eq.s32.totalorder %s27, 0
      %p90 = por %p88, %p89
      %p91 = scmp.ne.s32.totalorder %s79, %s80
      %p92 = scmp.eq.s32.totalorder %s28, 1
      %p93 = por %p91, %p92
      %p95 = scmp.ne.s32.totalorder %s80, %s94
      %p96 = scmp.eq.s32.totalorder %s28, 0
      %p97 = por %p95, %p96
      %s99 = sadd.s32 %s98, 1
      %p102 = scmp.eq.s32.totalorder %s22, 1
      %p103 = scmp.ne.s32.totalorder %s98, %s100
      %p104 = scmp.eq.s32.totalorder %s22, 0
      %p105 = por %p103, %p104
      %p106 = scmp.ne.s32.totalorder %s98, %s100
      %p107 = scmp.eq.s32.totalorder %s27, 1
      %p108 = por %p106, %p107
      %p109 = scmp.ne.s32.totalorder %s100, %s101
      %p110 = scmp.eq.s32.totalorder %s27, 0
      %p111 = por %p109, %p110
      %p112 = scmp.ne.s32.totalorder %s100, %s101
      %p113 = scmp.eq.s32.totalorder %s28, 1
      %p114 = por %p112, %p113
      %p116 = scmp.ne.s32.totalorder %s101, %s115
      %p117 = scmp.eq.s32.totalorder %s28, 0
      %p118 = por %p116, %p117
      %s119 = ssub.s32 %s22, %s29
      %p120 = scmp.eq.s32.totalorder %s119, 0
      %s122 = sadd.s32 %s121, 1
      %s123 = scalar_select %p120, %s121, %s122
      %p126 = pneg %p120
      %p127 = scmp.eq.s32.totalorder %s22, 1
      %p128 = por %p126, %p127
      %p129 = scmp.ne.s32.totalorder %s121, %s124
      %p130 = scmp.eq.s32.totalorder %s22, 0
      %p131 = por %p129, %p130
      %p132 = scmp.ne.s32.totalorder %s121, %s124
      %p133 = scmp.eq.s32.totalorder %s27, 1
      %p134 = por %p132, %p133
      %p135 = scmp.ne.s32.totalorder %s124, %s125
      %p136 = scmp.eq.s32.totalorder %s27, 0
      %p137 = por %p135, %p136
      %p138 = scmp.ne.s32.totalorder %s124, %s125
      %p139 = scmp.eq.s32.totalorder %s28, 1
      %p140 = por %p138, %p139
      %p142 = scmp.ne.s32.totalorder %s125, %s141
      %p143 = scmp.eq.s32.totalorder %s28, 0
      %p144 = por %p142, %p143
      %s145 = ssub.s32 %s22, %s29
      %p146 = scmp.eq.s32.totalorder %s145, 0
      %s148 = sadd.s32 %s147, 1
      %s149 = scalar_select %p146, %s147, %s148
      %p152 = pneg %p146
      %p153 = scmp.eq.s32.totalorder %s22, 1
      %p154 = por %p152, %p153
      %p155 = scmp.ne.s32.totalorder %s147, %s150
      %p156 = scmp.eq.s32.totalorder %s22, 0
      %p157 = por %p155, %p156
      %p158 = scmp.ne.s32.totalorder %s147, %s150
      %p159 = scmp.eq.s32.totalorder %s27, 1
      %p160 = por %p158, %p159
      %p161 = scmp.ne.s32.totalorder %s150, %s151
      %p162 = scmp.eq.s32.totalorder %s27, 0
      %p163 = por %p161, %p162
      %p164 = scmp.ne.s32.totalorder %s150, %s151
      %p165 = scmp.eq.s32.totalorder %s28, 1
      %p166 = por %p164, %p165
      %p168 = scmp.ne.s32.totalorder %s151, %s167
      %p169 = scmp.eq.s32.totalorder %s28, 0
      %p170 = por %p168, %p169
      %p171 = scmp.le.s32.totalorder 1, %s22
      %p172 = scmp.lt.s32.totalorder %s22, 3
      %p173 = pnand %p171, %p172
      %p174 = pneg %p173
      // Predicated region
      $region9: #{tpu_custom_call.1} parent=5 // pred_check
        _
      $region10: #{tpu_custom_call.1} parent=5 // pred_check_branch
        %176 = sbr.rel (%p173) target = $region12
      $region11: #{tpu_custom_call.1} parent=5 // pred_region
        %s177 = ssub.s32 %s22, 1
        // Predicated region
        $region13: #{tpu_custom_call.1} parent=11 // pred_check
          %p178 = pneg %p69
        $region14: #{tpu_custom_call.1} parent=11 // pred_check_branch
          %180 = sbr.rel (%p178) target = $region16
        $region15: #{tpu_custom_call.1} parent=11 // pred_region
          %182 = vsyncadd [#allocation6], 0
          %s184 = sshll.u32 %s1, 4
          %s185 = int_to_ptr.hbm [resolvable:$true] %s184
          %s186 = sshll.u32 [#allocation5], 4
          %s187 = int_to_ptr.vmem [resolvable:$true] %s186
          %189 = dma.hbm_to_vmem [thread:$0]  %s185, 16, %s187, [#allocation6]
        $region16: #{tpu_custom_call.1} parent=11 // pred_fallthru
          _
        // Predicated region
        $region17: #{tpu_custom_call.1} parent=11 // pred_check
          %p190 = pneg %p90
        $region18: #{tpu_custom_call.1} parent=11 // pred_check_branch
          %192 = sbr.rel (%p190) target = $region20
        $region19: #{tpu_custom_call.1} parent=11 // pred_region
          _
        $region20: #{tpu_custom_call.1} parent=11 // pred_fallthru
          _
        // Predicated region
        $region21: #{tpu_custom_call.1} parent=11 // pred_check
          %p193 = pneg %p111
        $region22: #{tpu_custom_call.1} parent=11 // pred_check_branch
          %195 = sbr.rel (%p193) target = $region24
        $region23: #{tpu_custom_call.1} parent=11 // pred_region
          %197 = vsyncadd [#allocation6], 0
          %s198 = sshll.u32 %s3, 4
          %s199 = int_to_ptr.hbm [resolvable:$true] %s198
          %s200 = sshll.u32 [#allocation7], 4
          %s201 = int_to_ptr.vmem [resolvable:$true] %s200
          %206 = dma.hbm_to_vmem [thread:$0]  %s199, 256, %s201, [#allocation6], 64, 64, 4
        $region24: #{tpu_custom_call.1} parent=11 // pred_fallthru
          _
      $region12: #{tpu_custom_call.1} parent=5 // pred_fallthru
        _
      %p207 = scmp.lt.s32.totalorder %s22, 2
      // Predicated region
      $region25: #{tpu_custom_call.1} parent=5 // pred_check
        %p208 = pneg %p207
      $region26: #{tpu_custom_call.1} parent=5 // pred_check_branch
        %210 = sbr.rel (%p208) target = $region28
      $region27: #{tpu_custom_call.1} parent=5 // pred_region
        // Predicated region
        $region29: #{tpu_custom_call.1} parent=27 // pred_check
          %p211 = pneg %p42
        $region30: #{tpu_custom_call.1} parent=27 // pred_check_branch
          %213 = sbr.rel (%p211) target = $region32
        $region31: #{tpu_custom_call.1} parent=27 // pred_region
          %s214 = sand.u32 %s32, 1
          %s215 = scalar_lea.sflag [#allocation3], %s214
          %s216 = sand.u32 %s32, 1
          %s217 = smul.addr %s216, 4
          %s218 = scalar_lea.vmem [#allocation2], %s217
          %220 = vsyncadd %s215, 0
          %s221 = smul.addr %s22, 4
          %s222 = scalar_lea.hbm %s0, %s221
          %s224 = sshll.u32 %s222, 4
          %s225 = int_to_ptr.hbm [resolvable:$true] %s224
          %s226 = sshll.u32 %s218, 4
          %s227 = int_to_ptr.vmem [resolvable:$true] %s226
          %229 = dma.hbm_to_vmem [thread:$0]  %s225, 64, %s227, %s215
        $region32: #{tpu_custom_call.1} parent=27 // pred_fallthru
          _
      $region28: #{tpu_custom_call.1} parent=5 // pred_fallthru
        _
      %p230 = scmp.le.s32.totalorder 1, %s22
      %p231 = scmp.lt.s32.totalorder %s22, 3
      %p232 = pnand %p230, %p231
      %p233 = pneg %p232
      // Predicated region
      $region33: #{tpu_custom_call.1} parent=5 // pred_check
        _
      $region34: #{tpu_custom_call.1} parent=5 // pred_check_branch
        %235 = sbr.rel (%p232) target = $region36
      $region35: #{tpu_custom_call.1} parent=5 // pred_region
        %s236 = ssub.s32 %s22, 1
        %s237 = sand.u32 %s35, 1
        %s238 = scalar_lea.sflag [#allocation3], %s237
        %s239 = sand.u32 %s35, 1
        %s240 = smul.addr %s239, 4
        %s241 = scalar_lea.vmem [#allocation2], %s240
        // Predicated region
        $region37: #{tpu_custom_call.1} parent=35 // pred_check
          %p242 = pneg %p48
        $region38: #{tpu_custom_call.1} parent=35 // pred_check_branch
          %244 = sbr.rel (%p242) target = $region40
        $region39: #{tpu_custom_call.1} parent=35 // pred_region
          %246 = dma.done %s238, 64
        $region40: #{tpu_custom_call.1} parent=35 // pred_fallthru
          _
        // Predicated region
        $region41: #{tpu_custom_call.1} parent=35 // pred_check
          %p247 = pneg %p69
        $region42: #{tpu_custom_call.1} parent=35 // pred_check_branch
          %249 = sbr.rel (%p247) target = $region44
        $region43: #{tpu_custom_call.1} parent=35 // pred_region
          %251 = dma.done [#allocation6], 16
        $region44: #{tpu_custom_call.1} parent=35 // pred_fallthru
          _
        // Predicated region
        $region45: #{tpu_custom_call.1} parent=35 // pred_check
          %p252 = pneg %p111
        $region46: #{tpu_custom_call.1} parent=35 // pred_check_branch
          %254 = sbr.rel (%p252) target = $region48
        $region47: #{tpu_custom_call.1} parent=35 // pred_region
          %256 = dma.done [#allocation6], 256
        $region48: #{tpu_custom_call.1} parent=35 // pred_fallthru
          _
        %s257 = sand.u32 %s35, 1
        %s258 = scalar_lea.sflag [#allocation3], %s257
        %s259 = sand.u32 %s35, 1
        %s260 = smul.addr %s259, 4
        %s261 = scalar_lea.vmem [#allocation2], %s260
        %p262 = pneg %p48
        %p263 = pneg %p45
        %p264 = pneg %p69
        %p265 = pneg %p66
        %p266 = pneg %p90
        %p267 = pneg %p87
        %p268 = pneg %p111
        %p269 = pneg %p108
        %p270 = pneg %p137
        %p271 = pneg %p134
        %s272 = sand.u32 %s124, 1
        %s273 = scalar_lea.sflag [#allocation4], %s272
        %s274 = sand.u32 %s124, 1
        %s275 = smul.addr %s274, 4
        %s276 = scalar_lea.vmem [#allocation8], %s275
        %p277 = pneg %p163
        %p278 = pneg %p160
        %s279 = sand.u32 %s150, 1
        %s280 = scalar_lea.sflag [#allocation10], %s279
        %s281 = sand.u32 %s150, 1
        %s282 = smul.addr %s281, 4
        %s283 = scalar_lea.vmem [#allocation9], %s282
        %v285 = vld [vmem:[%s241] sm:$0xf]
        %v286 = vunpack.c.l.bf16 %v285
        %v287 = vld [vmem:[#allocation5] sm:$0x1]
        %v288 = vld [vmem:[%s2] sm:$0x1]
        %vm289 = vcmask 261120
        %v290 = vsel %vm289, %v286, 0.0
        %291 = vadd.xlane.f32.xlu0 %v290
        %v292 = vpop.xlane.xlu0 %291
        %v293 = vrcp.pop 32.0
        %v294 = vmul.f32 32.0, %v293
        %v295 = vsub.f32 1.0, %v294
        %v296 = vmul.f32 %v293, %v295
        %v297 = vadd.f32 %v293, %v296
        %vm298 = vweird.f32 %v293
        %v299 = vsel %vm298, %v293, %v297
        %v300 = vmul.f32 %v292, %v299
        %v301 = vsub.f32 %v286, %v300
        %v302 = vmul.f32 %v301, %v301
        %v303 = vsel %vm289, %v302, 0.0
        %304 = vadd.xlane.f32.xlu0 %v303
        %v305 = vpop.xlane.xlu0 %304
        %v306 = vmul.f32 %v305, %v299
        %v307 = vadd.f32 %v306, 1e-06
        %v308 = vrsqrt.pop %v307
        %v309 = vmul.f32 %v308, %v307
        %v310 = vmul.f32 %v309, %v308
        %v311 = vmul.f32 0.5, %v310
        %v312 = vsub.f32 1.5, %v311
        %v313 = vmul.f32 %v308, %v312
        %vm314 = vweird.f32 %v307
        %vm315 = vweird.f32 %v308
        %vm316 = vmor %vm314, %vm315
        %v317 = vsel %vm316, %v308, %v313
        %v318 = vmul.f32 %v301, %v317
        %v320 = vperm.slane %v287, 0
        %v322 = vmul.f32 %v318, %v320
        %v324 = vperm.slane %v288, 0
        %v326 = vadd.f32 %v322, %v324
        %v327 = vpack.c.bf16 %v326, %v326
        %v328 = vld [vmem:[#allocation7] sm:$0xf]
        %v329 = vld [vmem:[#allocation7 + $0x4] sm:$0xf]
        %v330 = vld [vmem:[#allocation7 + $0x8] sm:$0xf]
        %v331 = vld [vmem:[#allocation7 + $0xc] sm:$0xf]
        %v336 = vunpack.c.l.b16 %v328
        %v337 = vunpack.c.l.b16 %v329
        %v338 = vunpack.c.l.b16 %v330
        %v339 = vunpack.c.l.b16 %v331
        %v340 = vpack.c.b16 %v337, %v336
        %v341 = vpack.c.b16 %v339, %v338
        %v345 = vsel %vm289, %v327, 0
        %347 = vmatpush.bf16.msra.mxu0 0
        %348 = vmatpush.bf16.msra.mxu0 0
        %349 = vmatpush.bf16.msra.mxu0 0
        %350 = vmatpush.bf16.msra.mxu0 0
        %351 = vmatpush.bf16.msra.mxu0 0
        %352 = vmatpush.bf16.msra.mxu0 0
        %353 = vmatpush.bf16.msra.mxu0 %v341
        %354 = vmatpush.bf16.msra.mxu0 %v340
        %355 = vmatmul.bf16.gmra.mxu0 %v345
        %v356 = vpop.f32.mrf.mxu0
        %v357 = vadd.f32 0.0, %v356
        %v358 = vpop.f32.mrf.mxu0
        %359 = vdwg.mxu0
        %v360 = vpack.c.bf16 %v357, %v357
        %vm361 = vcmask 257024
        %362 = vst.msk [vmem:[%s276] sm:$0xf] %vm361, %v360
        %v363 = vld [vmem:[#allocation7] sm:$0xf]
        %v364 = vld [vmem:[#allocation7 + $0x4] sm:$0xf]
        %v365 = vld [vmem:[#allocation7 + $0x8] sm:$0xf]
        %v366 = vld [vmem:[#allocation7 + $0xc] sm:$0xf]
        %v371 = vunpack.c.l.b16 %v363
        %v372 = vunpack.c.l.b16 %v364
        %v373 = vunpack.c.l.b16 %v365
        %v374 = vunpack.c.l.b16 %v366
        %v375 = vpack.c.b16 %v372, %v371
        %v376 = vpack.c.b16 %v374, %v373
        %377 = vrot.lane.b32.xlu0 %v375, 96
        %v378 = vpop.permute.xlu0 %377
        %379 = vrot.lane.b32.xlu0 %v376, 96
        %v380 = vpop.permute.xlu0 %379
        %383 = vmatpush.bf16.msra.mxu0 0
        %384 = vmatpush.bf16.msra.mxu0 0
        %385 = vmatpush.bf16.msra.mxu0 0
        %386 = vmatpush.bf16.msra.mxu0 0
        %387 = vmatpush.bf16.msra.mxu0 0
        %388 = vmatpush.bf16.msra.mxu0 0
        %389 = vmatpush.bf16.msra.mxu0 %v380
        %390 = vmatpush.bf16.msra.mxu0 %v378
        %391 = vmatmul.bf16.gmra.mxu0 %v345
        %v392 = vpop.f32.mrf.mxu0
        %v393 = vadd.f32 0.0, %v392
        %v394 = vpop.f32.mrf.mxu0
        %395 = vdwg.mxu0
        %v396 = vpack.c.bf16 %v393, %v393
        %vm397 = vcmask 519168
        %398 = vst.msk [vmem:[%s283] sm:$0xf] %vm397, %v396
        %s399 = sand.u32 %s124, 1
        %s400 = scalar_lea.sflag [#allocation4], %s399
        %s401 = sand.u32 %s124, 1
        %s402 = smul.addr %s401, 4
        %s403 = scalar_lea.vmem [#allocation8], %s402
        %s404 = sand.u32 %s150, 1
        %s405 = scalar_lea.sflag [#allocation10], %s404
        %s406 = sand.u32 %s150, 1
        %s407 = smul.addr %s406, 4
        %s408 = scalar_lea.vmem [#allocation9], %s407
        // Predicated region
        $region49: #{tpu_custom_call.1} parent=35 // pred_check
          %p409 = pneg %p134
        $region50: #{tpu_custom_call.1} parent=35 // pred_check_branch
          %411 = sbr.rel (%p409) target = $region52
        $region51: #{tpu_custom_call.1} parent=35 // pred_region
          %413 = vsyncadd %s400, 0
          %s414 = smul.addr %s27, 4
          %s415 = scalar_lea.hbm %s4, %s414
          %s417 = sshll.u32 %s403, 4
          %s418 = int_to_ptr.vmem [resolvable:$true] %s417
          %s419 = sshll.u32 %s415, 4
          %s420 = int_to_ptr.hbm [resolvable:$true] %s419
          %422 = dma.vmem_to_hbm [thread:$0]  %s418, 64, %s420, %s400
        $region52: #{tpu_custom_call.1} parent=35 // pred_fallthru
          _
        // Predicated region
        $region53: #{tpu_custom_call.1} parent=35 // pred_check
          %p423 = pneg %p160
        $region54: #{tpu_custom_call.1} parent=35 // pred_check_branch
          %425 = sbr.rel (%p423) target = $region56
        $region55: #{tpu_custom_call.1} parent=35 // pred_region
          %427 = vsyncadd %s405, 0
          %s428 = smul.addr %s27, 4
          %s429 = scalar_lea.hbm %s5, %s428
          %s431 = sshll.u32 %s408, 4
          %s432 = int_to_ptr.vmem [resolvable:$true] %s431
          %s433 = sshll.u32 %s429, 4
          %s434 = int_to_ptr.hbm [resolvable:$true] %s433
          %436 = dma.vmem_to_hbm [thread:$0]  %s432, 64, %s434, %s405
        $region56: #{tpu_custom_call.1} parent=35 // pred_fallthru
          _
      $region36: #{tpu_custom_call.1} parent=5 // pred_fallthru
        _
      %p437 = scmp.le.s32.totalorder 2, %s22
      // Predicated region
      $region57: #{tpu_custom_call.1} parent=5 // pred_check
        %p438 = pneg %p437
      $region58: #{tpu_custom_call.1} parent=5 // pred_check_branch
        %440 = sbr.rel (%p438) target = $region60
      $region59: #{tpu_custom_call.1} parent=5 // pred_region
        %s441 = ssub.s32 %s22, 2
        // Predicated region
        $region61: #{tpu_custom_call.1} parent=59 // pred_check
          %p442 = pneg %p140
        $region62: #{tpu_custom_call.1} parent=59 // pred_check_branch
          %444 = sbr.rel (%p442) target = $region64
        $region63: #{tpu_custom_call.1} parent=59 // pred_region
          %s445 = sand.u32 %s125, 1
          %s446 = scalar_lea.sflag [#allocation4], %s445
          %s447 = sand.u32 %s125, 1
          %s448 = smul.addr %s447, 4
          %s449 = scalar_lea.vmem [#allocation8], %s448
          %451 = dma.done %s446, 64
        $region64: #{tpu_custom_call.1} parent=59 // pred_fallthru
          _
        // Predicated region
        $region65: #{tpu_custom_call.1} parent=59 // pred_check
          %p452 = pneg %p166
        $region66: #{tpu_custom_call.1} parent=59 // pred_check_branch
          %454 = sbr.rel (%p452) target = $region68
        $region67: #{tpu_custom_call.1} parent=59 // pred_region
          %s455 = sand.u32 %s151, 1
          %s456 = scalar_lea.sflag [#allocation10], %s455
          %s457 = sand.u32 %s151, 1
          %s458 = smul.addr %s457, 4
          %s459 = scalar_lea.vmem [#allocation9], %s458
          %461 = dma.done %s456, 64
        $region68: #{tpu_custom_call.1} parent=59 // pred_fallthru
          _
      $region60: #{tpu_custom_call.1} parent=5 // pred_fallthru
        _
    $region6: #{tpu_custom_call.1} parent=1 // loop_footer
      %s26 = sadd.s32 1, %s22
    $region7: #{tpu_custom_call.1} parent=1 // loop_footer_branch
      %21 = sbr.rel target = $region3
    $region8: #{tpu_custom_call.1} parent=1 // loop_exit
      _
    %462 = vsyncpa [#allocation3], 1
    %s463 = scalar_lea.sflag [#allocation3], 1
    %464 = vsyncpa %s463, 1
    %465 = vsyncpa [#allocation6], 1
    %466 = vsyncpa [#allocation4], 1
    %s467 = scalar_lea.sflag [#allocation4], 1
    %468 = vsyncpa %s467, 1
    %469 = vsyncpa [#allocation10], 1
    %s470 = scalar_lea.sflag [#allocation10], 1
    %471 = vsyncpa %s470, 1

</llo_original>
